<compile_context>
chip_gen: v5e
topology: v5e:2x2
jax: 0.10.0
libtpu: 0.0.40
codegen_flags: <defaults>
</compile_context>

<pallas_src>
import functools
import math

import jax
import jax.numpy as jnp
import numpy as np
from jax.experimental import pallas as pl
from jax.experimental.pallas import tpu as pltpu


# ----------------------------- fused Pallas kernel -----------------------------

def _mha_group_kernel(x_ref, wqkv_ref, bqkv_ref, wo_ref, bo_ref, o_ref, acc_ref,
                      *, g, dh, compute_dtype):
    # x_ref:    (1, S, H)        one batch element, VMEM-resident across the head-group axis
    # wqkv_ref: (nG, H, 3*G)     packed [Q_group|K_group|V_group] weights, fully resident (G = g*dh)
    # bqkv_ref: (nG, 1, 3*G)     packed projection biases (f32)
    # wo_ref:   (nG, G, H)       output-linear rows for each head group
    # bo_ref:   (1, H)           output-linear bias (f32)
    # o_ref:    (1, S, H)        output block (written on the last group only)
    # acc_ref:  (S, H) f32       VMEM accumulator, persists across the group grid axis
    gi = pl.program_id(1)
    n_groups = pl.num_programs(1)
    G = g * dh

    @pl.when(gi == 0)
    def _init():
        # Start the accumulator at the output-linear bias: saves a separate (S, H) add at the end.
        acc_ref[...] = jnp.broadcast_to(bo_ref[...].astype(jnp.float32), acc_ref.shape)

    x = x_ref[0].astype(compute_dtype)                                           # (S, H)

    # One wide MXU pass for this group's q|k|v projection: N = 3*G (multiple of 128 lanes).
    qkv = jnp.dot(x, wqkv_ref[gi], preferred_element_type=jnp.float32) + bqkv_ref[gi]   # (S, 3G) f32

    # Group-level slices sit on 128-lane boundaries; per-head views are stacked to (g, S, dh).
    def split_heads(base):
        return jnp.stack([qkv[:, base + h * dh: base + (h + 1) * dh] for h in range(g)],
                         axis=0).astype(compute_dtype)

    q = split_heads(0)          # (g, S, dh); the 1/sqrt(dh) scale is already folded into wq/bq
    k = split_heads(G)
    v = split_heads(2 * G)

    # Batched scores + numerically stable softmax over all heads of the group (kept f32 on VPU/EUP).
    s = jnp.einsum("hqd,hkd->hqk", q, k, preferred_element_type=jnp.float32)     # (g, S, S)
    m = jnp.max(s, axis=-1, keepdims=True)
    e = jnp.exp(s - m)                                                            # (g, S, S) f32
    denom = jnp.sum(e, axis=-1, keepdims=True)                                    # (g, S, 1)

    ctx = jnp.einsum("hqk,hkd->hqd", e.astype(compute_dtype), v,
                     preferred_element_type=jnp.float32)                          # (g, S, dh)
    ctx = ctx * pl.reciprocal(denom, approx=True)       # fold 1/denom into (S, dh); EUP slot

    # Concatenate the group's heads back to (S, G) and project with K = G full MXU rows.
    ctx_g = jnp.concatenate([ctx[h] for h in range(g)], axis=-1).astype(compute_dtype)   # (S, G)
    contrib = jnp.dot(ctx_g, wo_ref[gi], preferred_element_type=jnp.float32)             # (S, H)

    @pl.when(gi < n_groups - 1)
    def _accumulate():
        acc_ref[...] += contrib

    @pl.when(gi == n_groups - 1)
    def _finalize():
        # Write directly from acc + last contribution (no extra acc read-modify-write).
        o_ref[0] = (acc_ref[...] + contrib).astype(o_ref.dtype)


# ------------------------------- wrapper ---------------------------------

def multi_head_attention(hidden_state, params, *, compute_dtype=jnp.bfloat16,
                         heads_per_group=None):
    """hidden_state: [B, S, H]. params: dict of per-head weights (see init_params)."""
    B, S, H = hidden_state.shape
    wq, wk, wv = params["wq"], params["wk"], params["wv"]     # (nH, H, dh)
    bq, bk, bv = params["bq"], params["bk"], params["bv"]     # (nH, 1, dh)
    wo, bo = params["wo"], params["bo"]                       # (H, H), (1, H)
    nH, _, dh = wq.shape

    # Heads per grid step: make the grouped width g*dh a multiple of 128 lanes when possible
    # (pass heads_per_group = 256 // dh on v6e/v7x to get K = 256 on the output projection).
    if heads_per_group is None:
        g = max(1, 128 // dh)
        while nH % g:          # fall back to a divisor of nH
            g -= 1
    else:
        g = heads_per_group
        assert nH % g == 0, "heads_per_group must divide num_attention_heads"
    nG = nH // g
    G = g * dh

    # Fold the 1/sqrt(dh) softmax scale into the q projection: one wrapper-side multiply instead
    # of a VPU pass over every (S, S) scores tile inside the kernel.
    scale = 1.0 / math.sqrt(dh)
    wq = wq * scale
    bq = bq * scale

    def pack_groups(a):
        # (nH, R, dh) -> (nG, R, G): concatenate the g heads of each group along the last axis.
        R = a.shape[1]
        return a.reshape(nG, g, R, dh).transpose(0, 2, 1, 3).reshape(nG, R, G)

    # Pack q|k|v as [Q_group | K_group | V_group] so the in-kernel slices are 128-lane aligned and
    # the projection is one MXU pass with N = 3*G.  Weights are stored in compute_dtype (bf16
    # halves DMA/VMEM); biases stay f32 (added onto the f32 accumulation).
    wqkv = jnp.concatenate([pack_groups(wq), pack_groups(wk), pack_groups(wv)],
                           axis=-1).astype(compute_dtype)                 # (nG, H, 3G)
    bqkv = jnp.concatenate([pack_groups(bq), pack_groups(bk), pack_groups(bv)],
                           axis=-1).astype(jnp.float32)                   # (nG, 1, 3G)
    wo_groups = wo.reshape(nG, G, H).astype(compute_dtype)                # rows h*dh:(h+1)*dh per head
    bo = bo.astype(jnp.float32)

    kernel = functools.partial(_mha_group_kernel, g=g, dh=dh, compute_dtype=compute_dtype)

    return pl.pallas_call(
        kernel,
        out_shape=jax.ShapeDtypeStruct((B, S, H), hidden_state.dtype),
        grid_spec=pltpu.PrefetchScalarGridSpec(
            num_scalar_prefetch=0,
            grid=(B, nG),                            # head-group axis LAST: reduction into acc_ref
            in_specs=[
                pl.BlockSpec((1, S, H), lambda b, gi: (b, 0, 0)),        # x (resident over groups)
                # Weights/biases fully resident across the grid: DMA'd once, not once per step.
                # TODO(synk): for very large H on v7x (64 MiB VMEM) switch to per-group blocks,
                # e.g. block (1, H, 3*G) with index_map lambda b, gi: (gi, 0, 0).
                pl.BlockSpec((nG, H, 3 * G), lambda b, gi: (0, 0, 0)),   # packed wqkv
                pl.BlockSpec((nG, 1, 3 * G), lambda b, gi: (0, 0, 0)),   # packed bqkv
                pl.BlockSpec((nG, G, H), lambda b, gi: (0, 0, 0)),       # wo rows per group
                pl.BlockSpec((1, H), lambda b, gi: (0, 0)),              # bo
            ],
            out_specs=pl.BlockSpec((1, S, H), lambda b, gi: (b, 0, 0)),  # resident over groups
            scratch_shapes=[pltpu.VMEM((S, H), jnp.float32)],            # output accumulator
        ),
        compiler_params=pltpu.CompilerParams(
            dimension_semantics=("parallel", "arbitrary")),
    )(hidden_state, wqkv, bqkv, wo_groups, bo)


# ------------------------------ params / reference ------------------------------

def init_params(key, hidden_size, num_attention_heads):
    dh = hidden_size // num_attention_heads
    ks = jax.random.split(key, 8)
    s_in = 1.0 / math.sqrt(hidden_size)
    return {
        "wq": jax.random.uniform(ks[0], (num_attention_heads, hidden_size, dh), jnp.float32, -s_in, s_in),
        "wk": jax.random.uniform(ks[1], (num_attention_heads, hidden_size, dh), jnp.float32, -s_in, s_in),
        "wv": jax.random.uniform(ks[2], (num_attention_heads, hidden_size, dh), jnp.float32, -s_in, s_in),
        "bq": jax.random.uniform(ks[3], (num_attention_heads, 1, dh), jnp.float32, -s_in, s_in),
        "bk": jax.random.uniform(ks[4], (num_attention_heads, 1, dh), jnp.float32, -s_in, s_in),
        "bv": jax.random.uniform(ks[5], (num_attention_heads, 1, dh), jnp.float32, -s_in, s_in),
        "wo": jax.random.uniform(ks[6], (hidden_size, hidden_size), jnp.float32, -s_in, s_in),
        "bo": jax.random.uniform(ks[7], (1, hidden_size), jnp.float32, -s_in, s_in),
    }


def reference(hidden_state, params):
    """Pure-JAX reference matching the PyTorch forward pass (mask=None)."""
    nH, _, dh = params["wq"].shape
    outs = []
    for h in range(nH):
        q = hidden_state @ params["wq"][h] + params["bq"][h]
        k = hidden_state @ params["wk"][h] + params["bk"][h]
        v = hidden_state @ params["wv"][h] + params["bv"][h]
        scores = jnp.einsum("bqd,bkd->bqk", q, k) / math.sqrt(dh)
        w = jax.nn.softmax(scores, axis=-1)
        outs.append(jnp.einsum("bqk,bkd->bqd", w, v))
    concat = jnp.concatenate(outs, axis=-1)
    return concat @ params["wo"] + params["bo"]


if __name__ == "__main__":
    key = jax.random.PRNGKey(0)
    k_x1, k_p1, k_x2, k_p2 = jax.random.split(key, 4)

    # Config 1: single head group (dh = 32 -> g = 4, nG = 1).  H = 128 keeps everything lane-dense.
    B, S, H, NH = 2, 8, 128, 4
    x1 = jax.random.normal(k_x1, (B, S, H), dtype=jnp.float32)
    p1 = init_params(k_p1, H, NH)
    ref1 = reference(x1, p1)

    # Default bf16 MXU operands (f32 accumulation); loose tolerance covers bf16 rounding + approx recip.
    out_bf16 = jax.block_until_ready(multi_head_attention(x1, p1))
    np.testing.assert_allclose(np.asarray(out_bf16), np.asarray(ref1), rtol=5e-2, atol=5e-2)

    # f32 path for a tight numerical check (tolerance covers the EUP approximate reciprocal only).
    out_f32 = jax.block_until_ready(multi_head_attention(x1, p1, compute_dtype=jnp.float32))
    np.testing.assert_allclose(np.asarray(out_f32), np.asarray(ref1), rtol=2e-3, atol=2e-3)

    # Config 2: two head groups (exercises the cross-group accumulator path), f32.
    B2, S2, H2, NH2 = 2, 16, 256, 8
    x2 = jax.random.normal(k_x2, (B2, S2, H2), dtype=jnp.float32)
    p2 = init_params(k_p2, H2, NH2)
    out2 = jax.block_until_ready(multi_head_attention(x2, p2, compute_dtype=jnp.float32))
    ref2 = reference(x2, p2)
    np.testing.assert_allclose(np.asarray(out2), np.asarray(ref2), rtol=2e-3, atol=2e-3)

    print("KERNEL_OK")
</pallas_src>

<mosaic_0001>
module attributes {stable_mosaic.version = 11 : i64} {
  func.func @_mha_group_kernel(%arg0: i32, %arg1: i32, %arg2: memref<1x8x128xf32, #tpu.memory_space<vmem>>, %arg3: memref<1x128x384xbf16, #tpu.memory_space<vmem>>, %arg4: memref<1x1x384xf32, #tpu.memory_space<vmem>>, %arg5: memref<1x128x128xbf16, #tpu.memory_space<vmem>>, %arg6: memref<1x128xf32, #tpu.memory_space<vmem>>, %arg7: memref<1x8x128xf32, #tpu.memory_space<vmem>>, %arg8: memref<8x128xf32, #tpu.memory_space<vmem>>) attributes {dimension_semantics = [#tpu.dimension_semantics<parallel>, #tpu.dimension_semantics<arbitrary>], iteration_bounds = array<i64: 2, 1>, scalar_prefetch = 0 : i64, scratch_operands = 1 : i64, tpu.core_type = #tpu.core_type<tc>, window_params = [{transform_indices = @transform_0, window_bounds = array<i64: 1, 8, 128>}, {pipeline_mode = #tpu.pipeline_mode<synchronous>, transform_indices = @transform_1, window_bounds = array<i64: 1, 128, 384>}, {pipeline_mode = #tpu.pipeline_mode<synchronous>, transform_indices = @transform_2, window_bounds = array<i64: 1, 1, 384>}, {pipeline_mode = #tpu.pipeline_mode<synchronous>, transform_indices = @transform_3, window_bounds = array<i64: 1, 128, 128>}, {pipeline_mode = #tpu.pipeline_mode<synchronous>, transform_indices = @transform_4, window_bounds = array<i64: 1, 128>}, {transform_indices = @transform_5, window_bounds = array<i64: 1, 8, 128>}]} {
    %c0_i32 = arith.constant 0 : i32
    %0 = arith.cmpi eq, %arg1, %c0_i32 : i32
    %1 = arith.extui %0 : i1 to i32
    %c0_i32_0 = arith.constant 0 : i32
    %2 = arith.cmpi ne, %1, %c0_i32_0 : i32
    scf.if %2 {
      %c0_18 = arith.constant 0 : index
      %c0_19 = arith.constant 0 : index
      %78 = vector.load %arg6[%c0_18, %c0_19] : memref<1x128xf32, #tpu.memory_space<vmem>>, vector<1x128xf32>
      %79 = vector.shape_cast %78 : vector<1x128xf32> to vector<1x128xf32>
      %80 = vector.broadcast %79 : vector<1x128xf32> to vector<8x128xf32>
      %c0_20 = arith.constant 0 : index
      %c0_21 = arith.constant 0 : index
      %81 = vector.load %arg8[%c0_20, %c0_21] : memref<8x128xf32, #tpu.memory_space<vmem>>, vector<8x128xf32>
      tpu.vector_store %arg8[%c0_20, %c0_21], %80 {strides = array<i32>} : memref<8x128xf32, #tpu.memory_space<vmem>>, vector<8x128xf32>,
    } else {
    }
    %c0 = arith.constant 0 : index
    %c0_1 = arith.constant 0 : index
    %c0_2 = arith.constant 0 : index
    %3 = vector.load %arg2[%c0, %c0_1, %c0_2] : memref<1x8x128xf32, #tpu.memory_space<vmem>>, vector<1x8x128xf32>
    %4 = vector.shape_cast %3 : vector<1x8x128xf32> to vector<8x128xf32>
    %5 = arith.truncf %4 : vector<8x128xf32> to vector<8x128xbf16>
    %6 = arith.index_cast %arg1 : i32 to index
    %c0_3 = arith.constant 0 : index
    %c0_4 = arith.constant 0 : index
    %7 = vector.load %arg3[%6, %c0_3, %c0_4] : memref<1x128x384xbf16, #tpu.memory_space<vmem>>, vector<1x128x384xbf16>
    %8 = vector.shape_cast %7 : vector<1x128x384xbf16> to vector<128x384xbf16>
    %cst = arith.constant dense<0.000000e+00> : vector<8x384xf32>
    %9 = tpu.matmul %5, %8, %cst {dimension_numbers = #tpu.dot_dimension_numbers<[1], [0], [0], [1], [0, 0, 1, 1], [], []>} : vector<8x128xbf16>, vector<128x384xbf16>, vector<8x384xf32> -> vector<8x384xf32>
    %10 = arith.index_cast %arg1 : i32 to index
    %c0_5 = arith.constant 0 : index
    %c0_6 = arith.constant 0 : index
    %11 = vector.load %arg4[%10, %c0_5, %c0_6] : memref<1x1x384xf32, #tpu.memory_space<vmem>>, vector<1x1x384xf32>
    %12 = vector.shape_cast %11 : vector<1x1x384xf32> to vector<1x384xf32>
    %13 = vector.broadcast %12 : vector<1x384xf32> to vector<8x384xf32>
    %14 = arith.addf %9, %13 : vector<8x384xf32>
    %15 = vector.extract_strided_slice %14 {offsets = [0, 0], sizes = [8, 32], strides = [1, 1]} : vector<8x384xf32> to vector<8x32xf32>
    %16 = vector.extract_strided_slice %14 {offsets = [0, 32], sizes = [8, 32], strides = [1, 1]} : vector<8x384xf32> to vector<8x32xf32>
    %17 = vector.extract_strided_slice %14 {offsets = [0, 64], sizes = [8, 32], strides = [1, 1]} : vector<8x384xf32> to vector<8x32xf32>
    %18 = vector.extract_strided_slice %14 {offsets = [0, 96], sizes = [8, 32], strides = [1, 1]} : vector<8x384xf32> to vector<8x32xf32>
    %19 = vector.shape_cast %15 : vector<8x32xf32> to vector<1x8x32xf32>
    %20 = vector.shape_cast %16 : vector<8x32xf32> to vector<1x8x32xf32>
    %21 = vector.shape_cast %17 : vector<8x32xf32> to vector<1x8x32xf32>
    %22 = vector.shape_cast %18 : vector<8x32xf32> to vector<1x8x32xf32>
    %23 = tpu.concatenate %19, %20, %21, %22 in 0 : vector<1x8x32xf32>, vector<1x8x32xf32>, vector<1x8x32xf32>, vector<1x8x32xf32> -> vector<4x8x32xf32>
    %24 = arith.truncf %23 : vector<4x8x32xf32> to vector<4x8x32xbf16>
    %25 = vector.extract_strided_slice %14 {offsets = [0, 128], sizes = [8, 32], strides = [1, 1]} : vector<8x384xf32> to vector<8x32xf32>
    %26 = vector.extract_strided_slice %14 {offsets = [0, 160], sizes = [8, 32], strides = [1, 1]} : vector<8x384xf32> to vector<8x32xf32>
    %27 = vector.extract_strided_slice %14 {offsets = [0, 192], sizes = [8, 32], strides = [1, 1]} : vector<8x384xf32> to vector<8x32xf32>
    %28 = vector.extract_strided_slice %14 {offsets = [0, 224], sizes = [8, 32], strides = [1, 1]} : vector<8x384xf32> to vector<8x32xf32>
    %29 = vector.shape_cast %25 : vector<8x32xf32> to vector<1x8x32xf32>
    %30 = vector.shape_cast %26 : vector<8x32xf32> to vector<1x8x32xf32>
    %31 = vector.shape_cast %27 : vector<8x32xf32> to vector<1x8x32xf32>
    %32 = vector.shape_cast %28 : vector<8x32xf32> to vector<1x8x32xf32>
    %33 = tpu.concatenate %29, %30, %31, %32 in 0 : vector<1x8x32xf32>, vector<1x8x32xf32>, vector<1x8x32xf32>, vector<1x8x32xf32> -> vector<4x8x32xf32>
    %34 = arith.truncf %33 : vector<4x8x32xf32> to vector<4x8x32xbf16>
    %35 = vector.extract_strided_slice %14 {offsets = [0, 256], sizes = [8, 32], strides = [1, 1]} : vector<8x384xf32> to vector<8x32xf32>
    %36 = vector.extract_strided_slice %14 {offsets = [0, 288], sizes = [8, 32], strides = [1, 1]} : vector<8x384xf32> to vector<8x32xf32>
    %37 = vector.extract_strided_slice %14 {offsets = [0, 320], sizes = [8, 32], strides = [1, 1]} : vector<8x384xf32> to vector<8x32xf32>
    %38 = vector.extract_strided_slice %14 {offsets = [0, 352], sizes = [8, 32], strides = [1, 1]} : vector<8x384xf32> to vector<8x32xf32>
    %39 = vector.shape_cast %35 : vector<8x32xf32> to vector<1x8x32xf32>
    %40 = vector.shape_cast %36 : vector<8x32xf32> to vector<1x8x32xf32>
    %41 = vector.shape_cast %37 : vector<8x32xf32> to vector<1x8x32xf32>
    %42 = vector.shape_cast %38 : vector<8x32xf32> to vector<1x8x32xf32>
    %43 = tpu.concatenate %39, %40, %41, %42 in 0 : vector<1x8x32xf32>, vector<1x8x32xf32>, vector<1x8x32xf32>, vector<1x8x32xf32> -> vector<4x8x32xf32>
    %44 = arith.truncf %43 : vector<4x8x32xf32> to vector<4x8x32xbf16>
    "tpu.trace_start"() <{level = 10 : i32, message = "hqd,hkd->hqk"}> : () -> ()
    %cst_7 = arith.constant dense<0.000000e+00> : vector<4x8x8xf32>
    %45 = tpu.matmul %24, %34, %cst_7 {dimension_numbers = #tpu.dot_dimension_numbers<[2], [2], [1], [1], [0, 0, 0, 1, 1, 1], [0], [0]>} : vector<4x8x32xbf16>, vector<4x8x32xbf16>, vector<4x8x8xf32> -> vector<4x8x8xf32>
    "tpu.trace_stop"() : () -> ()
    %cst_8 = arith.constant dense<0xFF800000> : vector<4x8xf32>
    %46 = vector.multi_reduction <maximumf>, %45, %cst_8 [2] : vector<4x8x8xf32> to vector<4x8xf32>
    %47 = vector.shape_cast %46 : vector<4x8xf32> to vector<4x8x1xf32>
    %48 = vector.broadcast %47 : vector<4x8x1xf32> to vector<4x8x8xf32>
    %49 = arith.subf %45, %48 : vector<4x8x8xf32>
    %50 = math.exp %49 : vector<4x8x8xf32>
    %cst_9 = arith.constant dense<0.000000e+00> : vector<4x8xf32>
    %51 = vector.multi_reduction <add>, %50, %cst_9 [2] : vector<4x8x8xf32> to vector<4x8xf32>
    %52 = vector.shape_cast %51 : vector<4x8xf32> to vector<4x8x1xf32>
    %53 = arith.truncf %50 : vector<4x8x8xf32> to vector<4x8x8xbf16>
    "tpu.trace_start"() <{level = 10 : i32, message = "hqk,hkd->hqd"}> : () -> ()
    %cst_10 = arith.constant dense<0.000000e+00> : vector<4x8x32xf32>
    %54 = tpu.matmul %53, %44, %cst_10 {dimension_numbers = #tpu.dot_dimension_numbers<[2], [1], [1], [2], [0, 0, 0, 1, 1, 2], [0], [0]>} : vector<4x8x8xbf16>, vector<4x8x32xbf16>, vector<4x8x32xf32> -> vector<4x8x32xf32>
    "tpu.trace_stop"() : () -> ()
    %55 = tpu.reciprocal %52 {approx = true} : vector<4x8x1xf32> -> vector<4x8x1xf32>
    %56 = vector.broadcast %55 : vector<4x8x1xf32> to vector<4x8x32xf32>
    %57 = arith.mulf %54, %56 : vector<4x8x32xf32>
    %58 = vector.extract_strided_slice %57 {offsets = [0, 0, 0], sizes = [1, 8, 32], strides = [1, 1, 1]} : vector<4x8x32xf32> to vector<1x8x32xf32>
    %59 = vector.shape_cast %58 : vector<1x8x32xf32> to vector<8x32xf32>
    %60 = vector.extract_strided_slice %57 {offsets = [1, 0, 0], sizes = [1, 8, 32], strides = [1, 1, 1]} : vector<4x8x32xf32> to vector<1x8x32xf32>
    %61 = vector.shape_cast %60 : vector<1x8x32xf32> to vector<8x32xf32>
    %62 = vector.extract_strided_slice %57 {offsets = [2, 0, 0], sizes = [1, 8, 32], strides = [1, 1, 1]} : vector<4x8x32xf32> to vector<1x8x32xf32>
    %63 = vector.shape_cast %62 : vector<1x8x32xf32> to vector<8x32xf32>
    %64 = vector.extract_strided_slice %57 {offsets = [3, 0, 0], sizes = [1, 8, 32], strides = [1, 1, 1]} : vector<4x8x32xf32> to vector<1x8x32xf32>
    %65 = vector.shape_cast %64 : vector<1x8x32xf32> to vector<8x32xf32>
    %66 = tpu.concatenate %59, %61, %63, %65 in 1 : vector<8x32xf32>, vector<8x32xf32>, vector<8x32xf32>, vector<8x32xf32> -> vector<8x128xf32>
    %67 = arith.truncf %66 : vector<8x128xf32> to vector<8x128xbf16>
    %68 = arith.index_cast %arg1 : i32 to index
    %c0_11 = arith.constant 0 : index
    %c0_12 = arith.constant 0 : index
    %69 = vector.load %arg5[%68, %c0_11, %c0_12] : memref<1x128x128xbf16, #tpu.memory_space<vmem>>, vector<1x128x128xbf16>
    %70 = vector.shape_cast %69 : vector<1x128x128xbf16> to vector<128x128xbf16>
    %cst_13 = arith.constant dense<0.000000e+00> : vector<8x128xf32>
    %71 = tpu.matmul %67, %70, %cst_13 {dimension_numbers = #tpu.dot_dimension_numbers<[1], [0], [0], [1], [0, 0, 1, 1], [], []>} : vector<8x128xbf16>, vector<128x128xbf16>, vector<8x128xf32> -> vector<8x128xf32>
    %c0_i32_14 = arith.constant 0 : i32
    %72 = arith.cmpi slt, %arg1, %c0_i32_14 : i32
    %73 = arith.extui %72 : i1 to i32
    %c0_i32_15 = arith.constant 0 : i32
    %74 = arith.cmpi ne, %73, %c0_i32_15 : i32
    scf.if %74 {
      %c0_18 = arith.constant 0 : index
      %c0_19 = arith.constant 0 : index
      %78 = vector.load %arg8[%c0_18, %c0_19] : memref<8x128xf32, #tpu.memory_space<vmem>>, vector<8x128xf32>
      %79 = arith.addf %78, %71 : vector<8x128xf32>
      %c0_20 = arith.constant 0 : index
      %c0_21 = arith.constant 0 : index
      %80 = vector.load %arg8[%c0_20, %c0_21] : memref<8x128xf32, #tpu.memory_space<vmem>>, vector<8x128xf32>
      tpu.vector_store %arg8[%c0_20, %c0_21], %79 {strides = array<i32>} : memref<8x128xf32, #tpu.memory_space<vmem>>, vector<8x128xf32>,
    } else {
    }
    %c0_i32_16 = arith.constant 0 : i32
    %75 = arith.cmpi eq, %arg1, %c0_i32_16 : i32
    %76 = arith.extui %75 : i1 to i32
    %c0_i32_17 = arith.constant 0 : i32
    %77 = arith.cmpi ne, %76, %c0_i32_17 : i32
    scf.if %77 {
      %c0_18 = arith.constant 0 : index
      %c0_19 = arith.constant 0 : index
      %78 = vector.load %arg8[%c0_18, %c0_19] : memref<8x128xf32, #tpu.memory_space<vmem>>, vector<8x128xf32>
      %79 = arith.addf %78, %71 : vector<8x128xf32>
      %c0_20 = arith.constant 0 : index
      %c0_21 = arith.constant 0 : index
      %c0_22 = arith.constant 0 : index
      %80 = vector.load %arg7[%c0_20, %c0_21, %c0_22] : memref<1x8x128xf32, #tpu.memory_space<vmem>>, vector<1x8x128xf32>
      %81 = vector.shape_cast %80 : vector<1x8x128xf32> to vector<8x128xf32>
      %82 = vector.shape_cast %79 : vector<8x128xf32> to vector<1x8x128xf32>
      tpu.vector_store %arg7[%c0_20, %c0_21, %c0_22], %82 {strides = array<i32>} : memref<1x8x128xf32, #tpu.memory_space<vmem>>, vector<1x8x128xf32>,
    } else {
    }
    return
  }
  func.func @transform_0(%arg0: i32, %arg1: i32) -> (i32, i32, i32) {
    %c0_i32 = arith.constant 0 : i32
    %c0_i32_0 = arith.constant 0 : i32
    %c0_i32_1 = arith.constant 0 : i32
    return %arg0, %c0_i32, %c0_i32_0 : i32, i32, i32
  }
  func.func @transform_1(%arg0: i32, %arg1: i32) -> (i32, i32, i32) {
    %c0_i32 = arith.constant 0 : i32
    %c0_i32_0 = arith.constant 0 : i32
    %c0_i32_1 = arith.constant 0 : i32
    %c0_i32_2 = arith.constant 0 : i32
    return %c0_i32, %c0_i32_0, %c0_i32_1 : i32, i32, i32
  }
  func.func @transform_2(%arg0: i32, %arg1: i32) -> (i32, i32, i32) {
    %c0_i32 = arith.constant 0 : i32
    %c0_i32_0 = arith.constant 0 : i32
    %c0_i32_1 = arith.constant 0 : i32
    %c0_i32_2 = arith.constant 0 : i32
    return %c0_i32, %c0_i32_0, %c0_i32_1 : i32, i32, i32
  }
  func.func @transform_3(%arg0: i32, %arg1: i32) -> (i32, i32, i32) {
    %c0_i32 = arith.constant 0 : i32
    %c0_i32_0 = arith.constant 0 : i32
    %c0_i32_1 = arith.constant 0 : i32
    %c0_i32_2 = arith.constant 0 : i32
    return %c0_i32, %c0_i32_0, %c0_i32_1 : i32, i32, i32
  }
  func.func @transform_4(%arg0: i32, %arg1: i32) -> (i32, i32) {
    %c0_i32 = arith.constant 0 : i32
    %c0_i32_0 = arith.constant 0 : i32
    %c0_i32_1 = arith.constant 0 : i32
    return %c0_i32, %c0_i32_0 : i32, i32
  }
  func.func @transform_5(%arg0: i32, %arg1: i32) -> (i32, i32, i32) {
    %c0_i32 = arith.constant 0 : i32
    %c0_i32_0 = arith.constant 0 : i32
    %c0_i32_1 = arith.constant 0 : i32
    return %arg0, %c0_i32, %c0_i32_0 : i32, i32, i32
  }
}

</mosaic_0001>

<llo_original>
// kernel: tpu_custom_call.1
$region0: #{tpu_custom_call.1}
  #allocation0 [shape = 'u32[]', space=smem, size = 0x4, offset = 0x4, fixed_abs, tag = 'smem constant byte address 0x4 - core index']
  #allocation1 [shape = 'u32[72,128]{1,0:T(1,128)}', space=vmem, size = 0x9000, scoped, tag = 'internal scratch']
  #allocation2 [shape = 'f32[8,128]{1,0:T(8,128)}', space=vmem, size = 0x1000, scoped, tag = 'scratch operand']
  %s0 = inlined_call_operand.hbm [shape: f32[2,8,128], index: 0, kind: input, shape index: {}]
  %s1 = inlined_call_operand.hbm [shape: bf16[1,128,384], index: 1, kind: input, shape index: {}]
  %s2 = inlined_call_operand.hbm [shape: f32[1,1,384], index: 2, kind: input, shape index: {}]
  %s3 = inlined_call_operand.hbm [shape: bf16[1,128,128], index: 3, kind: input, shape index: {}]
  %s4 = inlined_call_operand.vmem [shape: f32[1,128], index: 4, kind: input, shape index: {}]
  %s5 = inlined_call_operand.hbm [shape: f32[2,8,128], index: 5, kind: output, shape index: {}]
  %s6 = sld [smem:[#allocation0]]
  $region81: #{tpu_custom_call.1} parent=0
    _
  %s8 = ssub.s32 1, %s6
  %s9 = scalar_select 0, %s8, %s6
  $region1: #{tpu_custom_call.1} parent=0
    #allocation3 [shape = 'u8[8192]{0}', space=vmem, size = 0x2000, scoped, tag = 'input window, operand 0']
    #allocation4 [shape = 's32[2]{0}', space=sflag, size = 0x8, scoped, tag = 'scoped memory for tpu_custom_call.1']
    #allocation5 [shape = 's32[2]{0}', space=sflag, size = 0x8, scoped, tag = 'scoped memory for tpu_custom_call.1']
    #allocation6 [shape = 'u8[98304]{0}', space=vmem, size = 0x18000, scoped, tag = 'input window, operand 1, single buffered']
    #allocation7 [shape = 's32[1]{0}', space=sflag, size = 0x4, scoped, tag = 'scoped memory for tpu_custom_call.1']
    #allocation8 [shape = 'u8[1536]{0}', space=vmem, size = 0x800, scoped, tag = 'input window, operand 2, single buffered']
    #allocation9 [shape = 'u8[32768]{0}', space=vmem, size = 0x8000, scoped, tag = 'input window, operand 3, single buffered']
    #allocation10 [shape = 's32[1]{0}', space=sflag, size = 0x4, scoped, tag = 'scoped memory for tpu_custom_call.1']
    #allocation11 [shape = 'u8[8192]{0}', space=vmem, size = 0x2000, scoped, tag = 'output window, operand 0']
    %10 = vsyncpa [#allocation4], 0
    %s11 = scalar_lea.sflag [#allocation4], 1
    %12 = vsyncpa %s11, 0
    %13 = vsyncpa [#allocation7], 0
    %14 = vsyncpa [#allocation10], 0
    %15 = vsyncpa [#allocation5], 0
    %s16 = scalar_lea.sflag [#allocation5], 1
    %17 = vsyncpa %s16, 0
    loop: start=0, step=1, limit=4
    $region2: #{tpu_custom_call.1} parent=1 // loop_pre_header
      _
    $region3: #{tpu_custom_call.1} parent=1 // loop_header
      %s19 = sphi 0, %s23
      %p20 = scmp.ge.s32.totalorder %s19, 4
      %s26 = sphi 0, %s38
      %s27 = sphi 0, %s34
      %s28 = sphi 0, %s26
      %s29 = sphi 0, %s27
      %s30 = sphi 0, %s28
      %s31 = sphi 0, %s29
      %s41 = sphi 0, %s43
      %s44 = sphi 0, %s41
      %s45 = sphi 0, %s44
      %s61 = sphi 0, %s45
      %s65 = sphi 0, %s65
      %s67 = sphi 0, %s65
      %s68 = sphi 0, %s67
      %s82 = sphi 0, %s68
      %s86 = sphi 0, %s86
      %s88 = sphi 0, %s86
      %s89 = sphi 0, %s88
      %s103 = sphi 0, %s89
      %s107 = sphi 0, %s107
      %s109 = sphi 0, %s107
      %s110 = sphi 0, %s109
      %s124 = sphi 0, %s110
      %s128 = sphi 0, %s128
      %s130 = sphi 0, %s128
      %s131 = sphi 0, %s130
      %s145 = sphi 0, %s131
      %s151 = sphi 0, %s153
      %s154 = sphi 0, %s151
      %s155 = sphi 0, %s154
      %s171 = sphi 0, %s155
    $region4: #{tpu_custom_call.1} parent=1 // loop_header_branch
      %22 = sbr.rel (%p20) target = $region8
    $region5: #{tpu_custom_call.1} parent=1 // loop_body
      %s24 = ssub.s32 %s19, 1
      %s25 = ssub.s32 %s19, 2
      %s32 = sadd.s32 1, %s27
      %p33 = scmp.ge.s32.totalorder %s32, 1
      %s34 = scalar_select %p33, 0, %s32
      %s35 = sadd.s32 1, %s26
      %s36 = scalar_select %p33, %s35, %s26
      %p37 = scmp.ge.s32.totalorder %s36, 2
      %s38 = scalar_select %p37, 0, %s36
      %s39 = ssub.s32 %s26, %s38
      %p40 = scmp.eq.s32.totalorder %s39, 0
      %s42 = sadd.s32 %s41, 1
      %s43 = scalar_select %p40, %s41, %s42
      %p46 = pneg %p40
      %p47 = scmp.eq.s32.totalorder %s19, 1
      %p48 = por %p46, %p47
      %p49 = scmp.ne.s32.totalorder %s41, %s44
      %p50 = scmp.eq.s32.totalorder %s19, 0
      %p51 = por %p49, %p50
      %p52 = scmp.ne.s32.totalorder %s41, %s44
      %p53 = scmp.eq.s32.totalorder %s24, 1
      %p54 = por %p52, %p53
      %p55 = scmp.ne.s32.totalorder %s44, %s45
      %p56 = scmp.eq.s32.totalorder %s24, 0
      %p57 = por %p55, %p56
      %p58 = scmp.ne.s32.totalorder %s44, %s45
      %p59 = scmp.eq.s32.totalorder %s25, 1
      %p60 = por %p58, %p59
      %p62 = scmp.ne.s32.totalorder %s45, %s61
      %p63 = scmp.eq.s32.totalorder %s25, 0
      %p64 = por %p62, %p63
      %s66 = sadd.s32 %s65, 1
      %p69 = scmp.eq.s32.totalorder %s19, 1
      %p70 = scmp.ne.s32.totalorder %s65, %s67
      %p71 = scmp.eq.s32.totalorder %s19, 0
      %p72 = por %p70, %p71
      %p73 = scmp.ne.s32.totalorder %s65, %s67
      %p74 = scmp.eq.s32.totalorder %s24, 1
      %p75 = por %p73, %p74
      %p76 = scmp.ne.s32.totalorder %s67, %s68
      %p77 = scmp.eq.s32.totalorder %s24, 0
      %p78 = por %p76, %p77
      %p79 = scmp.ne.s32.totalorder %s67, %s68
      %p80 = scmp.eq.s32.totalorder %s25, 1
      %p81 = por %p79, %p80
      %p83 = scmp.ne.s32.totalorder %s68, %s82
      %p84 = scmp.eq.s32.totalorder %s25, 0
      %p85 = por %p83, %p84
      %s87 = sadd.s32 %s86, 1
      %p90 = scmp.eq.s32.totalorder %s19, 1
      %p91 = scmp.ne.s32.totalorder %s86, %s88
      %p92 = scmp.eq.s32.totalorder %s19, 0
      %p93 = por %p91, %p92
      %p94 = scmp.ne.s32.totalorder %s86, %s88
      %p95 = scmp.eq.s32.totalorder %s24, 1
      %p96 = por %p94, %p95
      %p97 = scmp.ne.s32.totalorder %s88, %s89
      %p98 = scmp.eq.s32.totalorder %s24, 0
      %p99 = por %p97, %p98
      %p100 = scmp.ne.s32.totalorder %s88, %s89
      %p101 = scmp.eq.s32.totalorder %s25, 1
      %p102 = por %p100, %p101
      %p104 = scmp.ne.s32.totalorder %s89, %s103
      %p105 = scmp.eq.s32.totalorder %s25, 0
      %p106 = por %p104, %p105
      %s108 = sadd.s32 %s107, 1
      %p111 = scmp.eq.s32.totalorder %s19, 1
      %p112 = scmp.ne.s32.totalorder %s107, %s109
      %p113 = scmp.eq.s32.totalorder %s19, 0
      %p114 = por %p112, %p113
      %p115 = scmp.ne.s32.totalorder %s107, %s109
      %p116 = scmp.eq.s32.totalorder %s24, 1
      %p117 = por %p115, %p116
      %p118 = scmp.ne.s32.totalorder %s109, %s110
      %p119 = scmp.eq.s32.totalorder %s24, 0
      %p120 = por %p118, %p119
      %p121 = scmp.ne.s32.totalorder %s109, %s110
      %p122 = scmp.eq.s32.totalorder %s25, 1
      %p123 = por %p121, %p122
      %p125 = scmp.ne.s32.totalorder %s110, %s124
      %p126 = scmp.eq.s32.totalorder %s25, 0
      %p127 = por %p125, %p126
      %s129 = sadd.s32 %s128, 1
      %p132 = scmp.eq.s32.totalorder %s19, 1
      %p133 = scmp.ne.s32.totalorder %s128, %s130
      %p134 = scmp.eq.s32.totalorder %s19, 0
      %p135 = por %p133, %p134
      %p136 = scmp.ne.s32.totalorder %s128, %s130
      %p137 = scmp.eq.s32.totalorder %s24, 1
      %p138 = por %p136, %p137
      %p139 = scmp.ne.s32.totalorder %s130, %s131
      %p140 = scmp.eq.s32.totalorder %s24, 0
      %p141 = por %p139, %p140
      %p142 = scmp.ne.s32.totalorder %s130, %s131
      %p143 = scmp.eq.s32.totalorder %s25, 1
      %p144 = por %p142, %p143
      %p146 = scmp.ne.s32.totalorder %s131, %s145
      %p147 = scmp.eq.s32.totalorder %s25, 0
      %p148 = por %p146, %p147
      %s149 = ssub.s32 %s26, %s38
      %p150 = scmp.eq.s32.totalorder %s149, 0
      %s152 = sadd.s32 %s151, 1
      %s153 = scalar_select %p150, %s151, %s152
      %p156 = pneg %p150
      %p157 = scmp.eq.s32.totalorder %s19, 1
      %p158 = por %p156, %p157
      %p159 = scmp.ne.s32.totalorder %s151, %s154
      %p160 = scmp.eq.s32.totalorder %s19, 0
      %p161 = por %p159, %p160
      %p162 = scmp.ne.s32.totalorder %s151, %s154
      %p163 = scmp.eq.s32.totalorder %s24, 1
      %p164 = por %p162, %p163
      %p165 = scmp.ne.s32.totalorder %s154, %s155
      %p166 = scmp.eq.s32.totalorder %s24, 0
      %p167 = por %p165, %p166
      %p168 = scmp.ne.s32.totalorder %s154, %s155
      %p169 = scmp.eq.s32.totalorder %s25, 1
      %p170 = por %p168, %p169
      %p172 = scmp.ne.s32.totalorder %s155, %s171
      %p173 = scmp.eq.s32.totalorder %s25, 0
      %p174 = por %p172, %p173
      %p175 = scmp.le.s32.totalorder 1, %s19
      %p176 = scmp.lt.s32.totalorder %s19, 3
      %p177 = pnand %p175, %p176
      %p178 = pneg %p177
      // Predicated region
      $region9: #{tpu_custom_call.1} parent=5 // pred_check
        _
      $region10: #{tpu_custom_call.1} parent=5 // pred_check_branch
        %180 = sbr.rel (%p177) target = $region12
      $region11: #{tpu_custom_call.1} parent=5 // pred_region
        %s181 = ssub.s32 %s19, 1
        // Predicated region
        $region13: #{tpu_custom_call.1} parent=11 // pred_check
          %p182 = pneg %p78
        $region14: #{tpu_custom_call.1} parent=11 // pred_check_branch
          %184 = sbr.rel (%p182) target = $region16
        $region15: #{tpu_custom_call.1} parent=11 // pred_region
          %186 = vsyncadd [#allocation7], 0
          %s187 = sshll.u32 %s1, 4
          %s188 = int_to_ptr.hbm [resolvable:$true] %s187
          %s189 = sshll.u32 [#allocation6], 4
          %s190 = int_to_ptr.vmem [resolvable:$true] %s189
          %195 = dma.hbm_to_vmem [thread:$0]  %s188, 3072, %s190, [#allocation7], 192, 192, 12
        $region16: #{tpu_custom_call.1} parent=11 // pred_fallthru
          _
        // Predicated region
        $region17: #{tpu_custom_call.1} parent=11 // pred_check
          %p196 = pneg %p99
        $region18: #{tpu_custom_call.1} parent=11 // pred_check_branch
          %198 = sbr.rel (%p196) target = $region20
        $region19: #{tpu_custom_call.1} parent=11 // pred_region
          %200 = vsyncadd [#allocation7], 0
          %s202 = sshll.u32 %s2, 4
          %s203 = int_to_ptr.hbm [resolvable:$true] %s202
          %s204 = sshll.u32 [#allocation8], 4
          %s205 = int_to_ptr.vmem [resolvable:$true] %s204
          %207 = dma.hbm_to_vmem [thread:$0]  %s203, 48, %s205, [#allocation7]
        $region20: #{tpu_custom_call.1} parent=11 // pred_fallthru
          _
        // Predicated region
        $region21: #{tpu_custom_call.1} parent=11 // pred_check
          %p208 = pneg %p120
        $region22: #{tpu_custom_call.1} parent=11 // pred_check_branch
          %210 = sbr.rel (%p208) target = $region24
        $region23: #{tpu_custom_call.1} parent=11 // pred_region
          %212 = vsyncadd [#allocation10], 0
          %s213 = sshll.u32 %s3, 4
          %s214 = int_to_ptr.hbm [resolvable:$true] %s213
          %s215 = sshll.u32 [#allocation9], 4
          %s216 = int_to_ptr.vmem [resolvable:$true] %s215
          %221 = dma.hbm_to_vmem [thread:$0]  %s214, 1024, %s216, [#allocation10], 64, 64, 4
        $region24: #{tpu_custom_call.1} parent=11 // pred_fallthru
          _
        // Predicated region
        $region25: #{tpu_custom_call.1} parent=11 // pred_check
          %p222 = pneg %p141
        $region26: #{tpu_custom_call.1} parent=11 // pred_check_branch
          %224 = sbr.rel (%p222) target = $region28
        $region27: #{tpu_custom_call.1} parent=11 // pred_region
          _
        $region28: #{tpu_custom_call.1} parent=11 // pred_fallthru
          _
      $region12: #{tpu_custom_call.1} parent=5 // pred_fallthru
        _
      %p225 = scmp.lt.s32.totalorder %s19, 2
      // Predicated region
      $region29: #{tpu_custom_call.1} parent=5 // pred_check
        %p226 = pneg %p225
      $region30: #{tpu_custom_call.1} parent=5 // pred_check_branch
        %228 = sbr.rel (%p226) target = $region32
      $region31: #{tpu_custom_call.1} parent=5 // pred_region
        // Predicated region
        $region33: #{tpu_custom_call.1} parent=31 // pred_check
          %p229 = pneg %p51
        $region34: #{tpu_custom_call.1} parent=31 // pred_check_branch
          %231 = sbr.rel (%p229) target = $region36
        $region35: #{tpu_custom_call.1} parent=31 // pred_region
          %s232 = sand.u32 %s41, 1
          %s233 = scalar_lea.sflag [#allocation4], %s232
          %s234 = sand.u32 %s41, 1
          %s235 = smul.addr %s234, 8
          %s236 = scalar_lea.vmem [#allocation3], %s235
          %238 = vsyncadd %s233, 0
          %s239 = smul.addr %s26, 8
          %s240 = scalar_lea.hbm %s0, %s239
          %s242 = sshll.u32 %s240, 4
          %s243 = int_to_ptr.hbm [resolvable:$true] %s242
          %s244 = sshll.u32 %s236, 4
          %s245 = int_to_ptr.vmem [resolvable:$true] %s244
          %247 = dma.hbm_to_vmem [thread:$0]  %s243, 128, %s245, %s233
        $region36: #{tpu_custom_call.1} parent=31 // pred_fallthru
          _
      $region32: #{tpu_custom_call.1} parent=5 // pred_fallthru
        _
      %p248 = scmp.le.s32.totalorder 1, %s19
      %p249 = scmp.lt.s32.totalorder %s19, 3
      %p250 = pnand %p248, %p249
      %p251 = pneg %p250
      // Predicated region
      $region37: #{tpu_custom_call.1} parent=5 // pred_check
        _
      $region38: #{tpu_custom_call.1} parent=5 // pred_check_branch
        %253 = sbr.rel (%p250) target = $region40
      $region39: #{tpu_custom_call.1} parent=5 // pred_region
        %s254 = ssub.s32 %s19, 1
        %s255 = sand.u32 %s44, 1
        %s256 = scalar_lea.sflag [#allocation4], %s255
        %s257 = sand.u32 %s44, 1
        %s258 = smul.addr %s257, 8
        %s259 = scalar_lea.vmem [#allocation3], %s258
        // Predicated region
        $region41: #{tpu_custom_call.1} parent=39 // pred_check
          %p260 = pneg %p57
        $region42: #{tpu_custom_call.1} parent=39 // pred_check_branch
          %262 = sbr.rel (%p260) target = $region44
        $region43: #{tpu_custom_call.1} parent=39 // pred_region
          %264 = dma.done %s256, 128
        $region44: #{tpu_custom_call.1} parent=39 // pred_fallthru
          _
        // Predicated region
        $region45: #{tpu_custom_call.1} parent=39 // pred_check
          %p265 = pneg %p78
        $region46: #{tpu_custom_call.1} parent=39 // pred_check_branch
          %267 = sbr.rel (%p265) target = $region48
        $region47: #{tpu_custom_call.1} parent=39 // pred_region
          %269 = dma.done [#allocation7], 3072
        $region48: #{tpu_custom_call.1} parent=39 // pred_fallthru
          _
        // Predicated region
        $region49: #{tpu_custom_call.1} parent=39 // pred_check
          %p270 = pneg %p99
        $region50: #{tpu_custom_call.1} parent=39 // pred_check_branch
          %272 = sbr.rel (%p270) target = $region52
        $region51: #{tpu_custom_call.1} parent=39 // pred_region
          %274 = dma.done [#allocation7], 48
        $region52: #{tpu_custom_call.1} parent=39 // pred_fallthru
          _
        // Predicated region
        $region53: #{tpu_custom_call.1} parent=39 // pred_check
          %p275 = pneg %p120
        $region54: #{tpu_custom_call.1} parent=39 // pred_check_branch
          %277 = sbr.rel (%p275) target = $region56
        $region55: #{tpu_custom_call.1} parent=39 // pred_region
          %279 = dma.done [#allocation10], 1024
        $region56: #{tpu_custom_call.1} parent=39 // pred_fallthru
          _
        %s280 = sand.u32 %s44, 1
        %s281 = scalar_lea.sflag [#allocation4], %s280
        %s282 = sand.u32 %s44, 1
        %s283 = smul.addr %s282, 8
        %s284 = scalar_lea.vmem [#allocation3], %s283
        %p285 = pneg %p57
        %p286 = pneg %p54
        %p287 = pneg %p78
        %p288 = pneg %p75
        %p289 = pneg %p99
        %p290 = pneg %p96
        %p291 = pneg %p120
        %p292 = pneg %p117
        %p293 = pneg %p141
        %p294 = pneg %p138
        %p295 = pneg %p167
        %p296 = pneg %p164
        %s297 = sand.u32 %s154, 1
        %s298 = scalar_lea.sflag [#allocation5], %s297
        %s299 = sand.u32 %s154, 1
        %s300 = smul.addr %s299, 8
        %s301 = scalar_lea.vmem [#allocation11], %s300
        %p303 = scmp.eq.s32.totalorder %s29, 0
        // Predicated region
        $region57: #{tpu_custom_call.1} parent=39 // pred_check
          %p304 = pneg %p303
        $region58: #{tpu_custom_call.1} parent=39 // pred_check_branch
          %306 = sbr.rel (%p304) target = $region60
        $region59: #{tpu_custom_call.1} parent=39 // pred_region
          %v307 = vld [vmem:[%s4] sm:$0x1]
          %v309 = vperm.slane %v307, 0
          %311 = vst [vmem:[#allocation2] sm:$0xff] %v309
        $region60: #{tpu_custom_call.1} parent=39 // pred_fallthru
          _
        %v312 = vld [vmem:[%s259] sm:$0xff]
        %v313 = vpack.c.bf16 %v312, %v312
        %s314 = smul.u32 %s29, 48
        %s315 = smul.addr %s314, 4
        %s316 = scalar_lea.vmem [#allocation6], %s315
        %v317 = vld [vmem:[%s316] sm:$0xff]
        %v318 = vld [vmem:[%s316 + $0x8] sm:$0xf]
        %v319 = vld [vmem:[%s316 + $0xc] sm:$0xff]
        %v320 = vld [vmem:[%s316 + $0x14] sm:$0xf]
        %v321 = vld [vmem:[%s316 + $0x18] sm:$0xff]
        %v322 = vld [vmem:[%s316 + $0x20] sm:$0xf]
        %v323 = vld [vmem:[%s316 + $0x24] sm:$0xff]
        %v324 = vld [vmem:[%s316 + $0x2c] sm:$0xf]
        %v325 = vld [vmem:[%s316 + $0x30] sm:$0xff]
        %v326 = vld [vmem:[%s316 + $0x38] sm:$0xf]
        %v327 = vld [vmem:[%s316 + $0x3c] sm:$0xff]
        %v328 = vld [vmem:[%s316 + $0x44] sm:$0xf]
        %v329 = vld [vmem:[%s316 + $0x48] sm:$0xff]
        %v330 = vld [vmem:[%s316 + $0x50] sm:$0xf]
        %v331 = vld [vmem:[%s316 + $0x54] sm:$0xff]
        %v332 = vld [vmem:[%s316 + $0x5c] sm:$0xf]
        %v333 = vld [vmem:[%s316 + $0x60] sm:$0xff]
        %v334 = vld [vmem:[%s316 + $0x68] sm:$0xf]
        %v335 = vld [vmem:[%s316 + $0x6c] sm:$0xff]
        %v336 = vld [vmem:[%s316 + $0x74] sm:$0xf]
        %v337 = vld [vmem:[%s316 + $0x78] sm:$0xff]
        %v338 = vld [vmem:[%s316 + $0x80] sm:$0xf]
        %v339 = vld [vmem:[%s316 + $0x84] sm:$0xff]
        %v340 = vld [vmem:[%s316 + $0x8c] sm:$0xf]
        %v341 = vld [vmem:[%s316 + $0x90] sm:$0xff]
        %v342 = vld [vmem:[%s316 + $0x98] sm:$0xf]
        %v343 = vld [vmem:[%s316 + $0x9c] sm:$0xff]
        %v344 = vld [vmem:[%s316 + $0xa4] sm:$0xf]
        %v345 = vld [vmem:[%s316 + $0xa8] sm:$0xff]
        %v346 = vld [vmem:[%s316 + $0xb0] sm:$0xf]
        %v347 = vld [vmem:[%s316 + $0xb4] sm:$0xff]
        %v348 = vld [vmem:[%s316 + $0xbc] sm:$0xf]
        %s349 = smul.u32 %s29, 3
        %s350 = scalar_lea.vmem [#allocation8], %s349
        %v351 = vld [vmem:[%s350] sm:$0x7]
        %v353 = vperm.slane %v351, 0
        %v354 = vperm.slane %v351, 1
        %v355 = vperm.slane %v351, 2
        %v391 = vunpack.c.l.b16 %v317
        %v392 = vunpack.c.h.b16 %v317
        %v393 = vunpack.c.l.b16 %v318
        %v394 = vunpack.c.l.b16 %v319
        %v395 = vunpack.c.h.b16 %v319
        %v396 = vunpack.c.l.b16 %v320
        %v397 = vunpack.c.l.b16 %v321
        %v398 = vunpack.c.h.b16 %v321
        %v399 = vunpack.c.l.b16 %v322
        %v400 = vunpack.c.l.b16 %v323
        %v401 = vunpack.c.h.b16 %v323
        %v402 = vunpack.c.l.b16 %v324
        %v403 = vunpack.c.l.b16 %v325
        %v404 = vunpack.c.h.b16 %v325
        %v405 = vunpack.c.l.b16 %v326
        %v406 = vunpack.c.l.b16 %v327
        %v407 = vunpack.c.h.b16 %v327
        %v408 = vunpack.c.l.b16 %v328
        %v409 = vunpack.c.l.b16 %v329
        %v410 = vunpack.c.h.b16 %v329
        %v411 = vunpack.c.l.b16 %v330
        %v412 = vunpack.c.l.b16 %v331
        %v413 = vunpack.c.h.b16 %v331
        %v414 = vunpack.c.l.b16 %v332
        %v415 = vunpack.c.l.b16 %v333
        %v416 = vunpack.c.h.b16 %v333
        %v417 = vunpack.c.l.b16 %v334
        %v418 = vunpack.c.l.b16 %v335
        %v419 = vunpack.c.h.b16 %v335
        %v420 = vunpack.c.l.b16 %v336
        %v421 = vunpack.c.l.b16 %v337
        %v422 = vunpack.c.h.b16 %v337
        %v423 = vunpack.c.l.b16 %v338
        %v424 = vunpack.c.l.b16 %v339
        %v425 = vunpack.c.h.b16 %v339
        %v426 = vunpack.c.l.b16 %v340
        %v427 = vunpack.c.l.b16 %v341
        %v428 = vunpack.c.h.b16 %v341
        %v429 = vunpack.c.l.b16 %v342
        %v430 = vunpack.c.l.b16 %v343
        %v431 = vunpack.c.h.b16 %v343
        %v432 = vunpack.c.l.b16 %v344
        %v433 = vunpack.c.l.b16 %v345
        %v434 = vunpack.c.h.b16 %v345
        %v435 = vunpack.c.l.b16 %v346
        %v436 = vunpack.c.l.b16 %v347
        %v437 = vunpack.c.h.b16 %v347
        %v438 = vunpack.c.l.b16 %v348
        %v439 = vpack.c.b16 %v394, %v391
        %v440 = vpack.c.b16 %v395, %v392
        %v441 = vpack.c.b16 %v396, %v393
        %v442 = vpack.c.b16 %v400, %v397
        %v443 = vpack.c.b16 %v401, %v398
        %v444 = vpack.c.b16 %v402, %v399
        %v445 = vpack.c.b16 %v406, %v403
        %v446 = vpack.c.b16 %v407, %v404
        %v447 = vpack.c.b16 %v408, %v405
        %v448 = vpack.c.b16 %v412, %v409
        %v449 = vpack.c.b16 %v413, %v410
        %v450 = vpack.c.b16 %v414, %v411
        %v451 = vpack.c.b16 %v418, %v415
        %v452 = vpack.c.b16 %v419, %v416
        %v453 = vpack.c.b16 %v420, %v417
        %v454 = vpack.c.b16 %v424, %v421
        %v455 = vpack.c.b16 %v425, %v422
        %v456 = vpack.c.b16 %v426, %v423
        %v457 = vpack.c.b16 %v430, %v427
        %v458 = vpack.c.b16 %v431, %v428
        %v459 = vpack.c.b16 %v432, %v429
        %v460 = vpack.c.b16 %v436, %v433
        %v461 = vpack.c.b16 %v437, %v434
        %v462 = vpack.c.b16 %v438, %v435
        %487 = vmatpush.bf16.msra.mxu0 %v460
        %488 = vmatpush.bf16.msra.mxu0 %v457
        %489 = vmatpush.bf16.msra.mxu0 %v454
        %490 = vmatpush.bf16.msra.mxu0 %v451
        %491 = vmatpush.bf16.msra.mxu0 %v448
        %492 = vmatpush.bf16.msra.mxu0 %v445
        %493 = vmatpush.bf16.msra.mxu0 %v442
        %494 = vmatpush.bf16.msra.mxu0 %v439
        %495 = vmatmul.bf16.gmra.mxu0 %v313
        %v496 = vpop.f32.mrf.mxu0
        %v497 = vadd.f32 %v353, %v496
        %v498 = vpop.f32.mrf.mxu0
        %499 = vdwg.mxu0
        %500 = vmatpush.bf16.msra.mxu0 %v461
        %501 = vmatpush.bf16.msra.mxu0 %v458
        %502 = vmatpush.bf16.msra.mxu0 %v455
        %503 = vmatpush.bf16.msra.mxu0 %v452
        %504 = vmatpush.bf16.msra.mxu0 %v449
        %505 = vmatpush.bf16.msra.mxu0 %v446
        %506 = vmatpush.bf16.msra.mxu0 %v443
        %507 = vmatpush.bf16.msra.mxu0 %v440
        %508 = vmatmul.bf16.gmra.mxu0 %v313
        %v509 = vpop.f32.mrf.mxu0
        %v510 = vadd.f32 %v354, %v509
        %v511 = vpop.f32.mrf.mxu0
        %512 = vdwg.mxu0
        %513 = vmatpush.bf16.msra.mxu0 %v462
        %514 = vmatpush.bf16.msra.mxu0 %v459
        %515 = vmatpush.bf16.msra.mxu0 %v456
        %516 = vmatpush.bf16.msra.mxu0 %v453
        %517 = vmatpush.bf16.msra.mxu0 %v450
        %518 = vmatpush.bf16.msra.mxu0 %v447
        %519 = vmatpush.bf16.msra.mxu0 %v444
        %520 = vmatpush.bf16.msra.mxu0 %v441
        %521 = vmatmul.bf16.gmra.mxu0 %v313
        %v522 = vpop.f32.mrf.mxu0
        %v523 = vadd.f32 %v355, %v522
        %v524 = vpop.f32.mrf.mxu0
        %525 = vdwg.mxu0
        %527 = vrot.lane.b32.xlu0 %v497, 96
        %v528 = vpop.permute.xlu0 %527
        %530 = vrot.lane.b32.xlu0 %v497, 64
        %v531 = vpop.permute.xlu0 %530
        %533 = vrot.lane.b32.xlu0 %v497, 32
        %v534 = vpop.permute.xlu0 %533
        %v536 = vpack.c.bf16 %v497, %v497
        %v537 = vpack.c.bf16 %v528, %v528
        %v538 = vpack.c.bf16 %v531, %v531
        %v539 = vpack.c.bf16 %v534, %v534
        %541 = vrot.lane.b32.xlu0 %v510, 96
        %v542 = vpop.permute.xlu0 %541
        %544 = vrot.lane.b32.xlu0 %v510, 64
        %v545 = vpop.permute.xlu0 %544
        %547 = vrot.lane.b32.xlu0 %v510, 32
        %v548 = vpop.permute.xlu0 %547
        %v550 = vpack.c.bf16 %v510, %v510
        %v551 = vpack.c.bf16 %v542, %v542
        %v552 = vpack.c.bf16 %v545, %v545
        %v553 = vpack.c.bf16 %v548, %v548
        %555 = vrot.lane.b32.xlu0 %v523, 96
        %v556 = vpop.permute.xlu0 %555
        %558 = vrot.lane.b32.xlu0 %v523, 64
        %v559 = vpop.permute.xlu0 %558
        %561 = vrot.lane.b32.xlu0 %v523, 32
        %v562 = vpop.permute.xlu0 %561
        %v564 = vpack.c.bf16 %v523, %v523
        %v565 = vpack.c.bf16 %v556, %v556
        %v566 = vpack.c.bf16 %v559, %v559
        %v567 = vpack.c.bf16 %v562, %v562
        %vm568 = vcmask 261120
        %v570 = vsel %vm568, %v536, 0
        %v573 = vsel %vm568, %v550, 0
        %575 = vmatpush.bf16.xpose.msra.mxu0 0
        %576 = vmatpush.bf16.xpose.msra.mxu0 0
        %577 = vmatpush.bf16.xpose.msra.mxu0 0
        %578 = vmatpush.bf16.xpose.msra.mxu0 0
        %579 = vmatpush.bf16.xpose.msra.mxu0 0
        %580 = vmatpush.bf16.xpose.msra.mxu0 0
        %581 = vmatpush.bf16.xpose.msra.mxu0 0
        %582 = vmatpush.bf16.xpose.msra.mxu0 %v573
        %583 = vmatmul.bf16.gmra.mxu0 %v570
        %v584 = vpop.f32.mrf.mxu0
        %v585 = vadd.f32 0.0, %v584
        %v586 = vpop.f32.mrf.mxu0
        %587 = vdwg.mxu0
        %v589 = vsel %vm568, %v537, 0
        %v592 = vsel %vm568, %v551, 0
        %594 = vmatpush.bf16.xpose.msra.mxu0 0
        %595 = vmatpush.bf16.xpose.msra.mxu0 0
        %596 = vmatpush.bf16.xpose.msra.mxu0 0
        %597 = vmatpush.bf16.xpose.msra.mxu0 0
        %598 = vmatpush.bf16.xpose.msra.mxu0 0
        %599 = vmatpush.bf16.xpose.msra.mxu0 0
        %600 = vmatpush.bf16.xpose.msra.mxu0 0
        %601 = vmatpush.bf16.xpose.msra.mxu0 %v592
        %602 = vmatmul.bf16.gmra.mxu0 %v589
        %v603 = vpop.f32.mrf.mxu0
        %v604 = vadd.f32 0.0, %v603
        %v605 = vpop.f32.mrf.mxu0
        %606 = vdwg.mxu0
        %v608 = vsel %vm568, %v538, 0
        %v611 = vsel %vm568, %v552, 0
        %613 = vmatpush.bf16.xpose.msra.mxu0 0
        %614 = vmatpush.bf16.xpose.msra.mxu0 0
        %615 = vmatpush.bf16.xpose.msra.mxu0 0
        %616 = vmatpush.bf16.xpose.msra.mxu0 0
        %617 = vmatpush.bf16.xpose.msra.mxu0 0
        %618 = vmatpush.bf16.xpose.msra.mxu0 0
        %619 = vmatpush.bf16.xpose.msra.mxu0 0
        %620 = vmatpush.bf16.xpose.msra.mxu0 %v611
        %621 = vmatmul.bf16.gmra.mxu0 %v608
        %v622 = vpop.f32.mrf.mxu0
        %v623 = vadd.f32 0.0, %v622
        %v624 = vpop.f32.mrf.mxu0
        %625 = vdwg.mxu0
        %v627 = vsel %vm568, %v539, 0
        %v630 = vsel %vm568, %v553, 0
        %632 = vmatpush.bf16.xpose.msra.mxu0 0
        %633 = vmatpush.bf16.xpose.msra.mxu0 0
        %634 = vmatpush.bf16.xpose.msra.mxu0 0
        %635 = vmatpush.bf16.xpose.msra.mxu0 0
        %636 = vmatpush.bf16.xpose.msra.mxu0 0
        %637 = vmatpush.bf16.xpose.msra.mxu0 0
        %638 = vmatpush.bf16.xpose.msra.mxu0 0
        %639 = vmatpush.bf16.xpose.msra.mxu0 %v630
        %640 = vmatmul.bf16.gmra.mxu0 %v627
        %v641 = vpop.f32.mrf.mxu0
        %v642 = vadd.f32 0.0, %v641
        %v643 = vpop.f32.mrf.mxu0
        %644 = vdwg.mxu0
        %vm645 = vcmask 64512
        %v646 = vsel %vm645, %v585, -inf
        %647 = vmax.xlane.f32.xlu0 %v646
        %v648 = vpop.xlane.xlu0 %647
        %v649 = vsel %vm645, %v604, -inf
        %650 = vmax.xlane.f32.xlu0 %v649
        %v651 = vpop.xlane.xlu0 %650
        %v652 = vsel %vm645, %v623, -inf
        %653 = vmax.xlane.f32.xlu0 %v652
        %v654 = vpop.xlane.xlu0 %653
        %v655 = vsel %vm645, %v642, -inf
        %656 = vmax.xlane.f32.xlu0 %v655
        %v657 = vpop.xlane.xlu0 %656
        %v658 = vsub.f32 %v585, %v648
        %v659 = vsub.f32 %v604, %v651
        %v660 = vsub.f32 %v623, %v654
        %v661 = vsub.f32 %v642, %v657
        %v662 = vmul.f32 %v658, 1.442695
        %v663 = vpow.pop %v662
        %v664 = vmul.f32 %v659, 1.442695
        %v665 = vpow.pop %v664
        %v666 = vmul.f32 %v660, 1.442695
        %v667 = vpow.pop %v666
        %v668 = vmul.f32 %v661, 1.442695
        %v669 = vpow.pop %v668
        %v670 = vsel %vm645, %v663, 0.0
        %671 = vadd.xlane.f32.xlu0 %v670
        %v672 = vpop.xlane.xlu0 %671
        %v673 = vsel %vm645, %v665, 0.0
        %674 = vadd.xlane.f32.xlu0 %v673
        %v675 = vpop.xlane.xlu0 %674
        %v676 = vsel %vm645, %v667, 0.0
        %677 = vadd.xlane.f32.xlu0 %v676
        %v678 = vpop.xlane.xlu0 %677
        %v679 = vsel %vm645, %v669, 0.0
        %680 = vadd.xlane.f32.xlu0 %v679
        %v681 = vpop.xlane.xlu0 %680
        %v682 = vpack.c.bf16 %v663, %v663
        %v683 = vpack.c.bf16 %v665, %v665
        %v684 = vpack.c.bf16 %v667, %v667
        %v685 = vpack.c.bf16 %v669, %v669
        %v687 = vsel %vm645, %v682, 0
        %vm689 = vcmask 1043456
        %v691 = vsel %vm689, %v564, 0
        %693 = vmatpush.bf16.msra.mxu0 0
        %694 = vmatpush.bf16.msra.mxu0 0
        %695 = vmatpush.bf16.msra.mxu0 0
        %696 = vmatpush.bf16.msra.mxu0 0
        %697 = vmatpush.bf16.msra.mxu0 0
        %698 = vmatpush.bf16.msra.mxu0 0
        %699 = vmatpush.bf16.msra.mxu0 0
        %700 = vmatpush.bf16.msra.mxu0 %v691
        %701 = vmatmul.bf16.gmra.mxu0 %v687
        %v702 = vpop.f32.mrf.mxu0
        %v703 = vadd.f32 0.0, %v702
        %v704 = vpop.f32.mrf.mxu0
        %705 = vdwg.mxu0
        %v707 = vsel %vm645, %v683, 0
        %v710 = vsel %vm689, %v565, 0
        %712 = vmatpush.bf16.msra.mxu0 0
        %713 = vmatpush.bf16.msra.mxu0 0
        %714 = vmatpush.bf16.msra.mxu0 0
        %715 = vmatpush.bf16.msra.mxu0 0
        %716 = vmatpush.bf16.msra.mxu0 0
        %717 = vmatpush.bf16.msra.mxu0 0
        %718 = vmatpush.bf16.msra.mxu0 0
        %719 = vmatpush.bf16.msra.mxu0 %v710
        %720 = vmatmul.bf16.gmra.mxu0 %v707
        %v721 = vpop.f32.mrf.mxu0
        %v722 = vadd.f32 0.0, %v721
        %v723 = vpop.f32.mrf.mxu0
        %724 = vdwg.mxu0
        %v726 = vsel %vm645, %v684, 0
        %v729 = vsel %vm689, %v566, 0
        %731 = vmatpush.bf16.msra.mxu0 0
        %732 = vmatpush.bf16.msra.mxu0 0
        %733 = vmatpush.bf16.msra.mxu0 0
        %734 = vmatpush.bf16.msra.mxu0 0
        %735 = vmatpush.bf16.msra.mxu0 0
        %736 = vmatpush.bf16.msra.mxu0 0
        %737 = vmatpush.bf16.msra.mxu0 0
        %738 = vmatpush.bf16.msra.mxu0 %v729
        %739 = vmatmul.bf16.gmra.mxu0 %v726
        %v740 = vpop.f32.mrf.mxu0
        %v741 = vadd.f32 0.0, %v740
        %v742 = vpop.f32.mrf.mxu0
        %743 = vdwg.mxu0
        %v745 = vsel %vm645, %v685, 0
        %v748 = vsel %vm689, %v567, 0
        %750 = vmatpush.bf16.msra.mxu0 0
        %751 = vmatpush.bf16.msra.mxu0 0
        %752 = vmatpush.bf16.msra.mxu0 0
        %753 = vmatpush.bf16.msra.mxu0 0
        %754 = vmatpush.bf16.msra.mxu0 0
        %755 = vmatpush.bf16.msra.mxu0 0
        %756 = vmatpush.bf16.msra.mxu0 0
        %757 = vmatpush.bf16.msra.mxu0 %v748
        %758 = vmatmul.bf16.gmra.mxu0 %v745
        %v759 = vpop.f32.mrf.mxu0
        %v760 = vadd.f32 0.0, %v759
        %v761 = vpop.f32.mrf.mxu0
        %762 = vdwg.mxu0
        %v763 = vrcp.pop %v672
        %v764 = vrcp.pop %v675
        %v765 = vrcp.pop %v678
        %v766 = vrcp.pop %v681
        %v767 = vmul.f32 %v703, %v763
        %v768 = vmul.f32 %v722, %v764
        %v769 = vmul.f32 %v741, %v765
        %v770 = vmul.f32 %v760, %v766
        %772 = vrot.lane.b32.xlu0 %v768, 32
        %v773 = vpop.permute.xlu0 %772
        %776 = vrot.lane.b32.xlu0 %v769, 64
        %v777 = vpop.permute.xlu0 %776
        %780 = vrot.lane.b32.xlu0 %v770, 96
        %v781 = vpop.permute.xlu0 %780
        %v783 = vsel %vm568, %v767, %v773
        %vm784 = vcmask 523264
        %v785 = vsel %vm784, %v783, %v777
        %vm786 = vcmask 785408
        %v787 = vsel %vm786, %v785, %v781
        %v788 = vpack.c.bf16 %v787, %v787
        %s789 = smul.u32 %s29, 16
        %s790 = smul.addr %s789, 4
        %s791 = scalar_lea.vmem [#allocation9], %s790
        %v792 = vld [vmem:[%s791] sm:$0xf]
        %v793 = vld [vmem:[%s791 + $0x4] sm:$0xf]
        %v794 = vld [vmem:[%s791 + $0x8] sm:$0xf]
        %v795 = vld [vmem:[%s791 + $0xc] sm:$0xf]
        %v796 = vld [vmem:[%s791 + $0x10] sm:$0xf]
        %v797 = vld [vmem:[%s791 + $0x14] sm:$0xf]
        %v798 = vld [vmem:[%s791 + $0x18] sm:$0xf]
        %v799 = vld [vmem:[%s791 + $0x1c] sm:$0xf]
        %v800 = vld [vmem:[%s791 + $0x20] sm:$0xf]
        %v801 = vld [vmem:[%s791 + $0x24] sm:$0xf]
        %v802 = vld [vmem:[%s791 + $0x28] sm:$0xf]
        %v803 = vld [vmem:[%s791 + $0x2c] sm:$0xf]
        %v804 = vld [vmem:[%s791 + $0x30] sm:$0xf]
        %v805 = vld [vmem:[%s791 + $0x34] sm:$0xf]
        %v806 = vld [vmem:[%s791 + $0x38] sm:$0xf]
        %v807 = vld [vmem:[%s791 + $0x3c] sm:$0xf]
        %v824 = vunpack.c.l.b16 %v792
        %v825 = vunpack.c.l.b16 %v793
        %v826 = vunpack.c.l.b16 %v794
        %v827 = vunpack.c.l.b16 %v795
        %v828 = vunpack.c.l.b16 %v796
        %v829 = vunpack.c.l.b16 %v797
        %v830 = vunpack.c.l.b16 %v798
        %v831 = vunpack.c.l.b16 %v799
        %v832 = vunpack.c.l.b16 %v800
        %v833 = vunpack.c.l.b16 %v801
        %v834 = vunpack.c.l.b16 %v802
        %v835 = vunpack.c.l.b16 %v803
        %v836 = vunpack.c.l.b16 %v804
        %v837 = vunpack.c.l.b16 %v805
        %v838 = vunpack.c.l.b16 %v806
        %v839 = vunpack.c.l.b16 %v807
        %v840 = vpack.c.b16 %v825, %v824
        %v841 = vpack.c.b16 %v827, %v826
        %v842 = vpack.c.b16 %v829, %v828
        %v843 = vpack.c.b16 %v831, %v830
        %v844 = vpack.c.b16 %v833, %v832
        %v845 = vpack.c.b16 %v835, %v834
        %v846 = vpack.c.b16 %v837, %v836
        %v847 = vpack.c.b16 %v839, %v838
        %856 = vmatpush.bf16.msra.mxu0 %v847
        %857 = vmatpush.bf16.msra.mxu0 %v846
        %858 = vmatpush.bf16.msra.mxu0 %v845
        %859 = vmatpush.bf16.msra.mxu0 %v844
        %860 = vmatpush.bf16.msra.mxu0 %v843
        %861 = vmatpush.bf16.msra.mxu0 %v842
        %862 = vmatpush.bf16.msra.mxu0 %v841
        %863 = vmatpush.bf16.msra.mxu0 %v840
        %864 = vmatmul.bf16.gmra.mxu0 %v788
        %v865 = vpop.f32.mrf.mxu0
        %v866 = vadd.f32 0.0, %v865
        %v867 = vpop.f32.mrf.mxu0
        %868 = vdwg.mxu0
        %p869 = scmp.lt.s32.totalorder %s29, 0
        // Predicated region
        $region61: #{tpu_custom_call.1} parent=39 // pred_check
          %p870 = pneg %p869
        $region62: #{tpu_custom_call.1} parent=39 // pred_check_branch
          %872 = sbr.rel (%p870) target = $region64
        $region63: #{tpu_custom_call.1} parent=39 // pred_region
          %v873 = vld [vmem:[#allocation2] sm:$0xff]
          %v874 = vadd.f32 %v873, %v866
          %875 = vst [vmem:[#allocation2] sm:$0xff] %v874
        $region64: #{tpu_custom_call.1} parent=39 // pred_fallthru
          _
        // Predicated region
        $region65: #{tpu_custom_call.1} parent=39 // pred_check
          %p876 = pneg %p303
        $region66: #{tpu_custom_call.1} parent=39 // pred_check_branch
          %878 = sbr.rel (%p876) target = $region68
        $region67: #{tpu_custom_call.1} parent=39 // pred_region
          %v879 = vld [vmem:[#allocation2] sm:$0xff]
          %v880 = vadd.f32 %v879, %v866
          %881 = vst [vmem:[%s301] sm:$0xff] %v880
        $region68: #{tpu_custom_call.1} parent=39 // pred_fallthru
          _
        %s882 = sand.u32 %s154, 1
        %s883 = scalar_lea.sflag [#allocation5], %s882
        %s884 = sand.u32 %s154, 1
        %s885 = smul.addr %s884, 8
        %s886 = scalar_lea.vmem [#allocation11], %s885
        // Predicated region
        $region69: #{tpu_custom_call.1} parent=39 // pred_check
          %p887 = pneg %p164
        $region70: #{tpu_custom_call.1} parent=39 // pred_check_branch
          %889 = sbr.rel (%p887) target = $region72
        $region71: #{tpu_custom_call.1} parent=39 // pred_region
          %891 = vsyncadd %s883, 0
          %s892 = smul.addr %s28, 8
          %s893 = scalar_lea.hbm %s5, %s892
          %s895 = sshll.u32 %s886, 4
          %s896 = int_to_ptr.vmem [resolvable:$true] %s895
          %s897 = sshll.u32 %s893, 4
          %s898 = int_to_ptr.hbm [resolvable:$true] %s897
          %900 = dma.vmem_to_hbm [thread:$0]  %s896, 128, %s898, %s883
        $region72: #{tpu_custom_call.1} parent=39 // pred_fallthru
          _
      $region40: #{tpu_custom_call.1} parent=5 // pred_fallthru
        _
      %p901 = scmp.le.s32.totalorder 2, %s19
      // Predicated region
      $region73: #{tpu_custom_call.1} parent=5 // pred_check
        %p902 = pneg %p901
      $region74: #{tpu_custom_call.1} parent=5 // pred_check_branch
        %904 = sbr.rel (%p902) target = $region76
      $region75: #{tpu_custom_call.1} parent=5 // pred_region
        %s905 = ssub.s32 %s19, 2
        // Predicated region
        $region77: #{tpu_custom_call.1} parent=75 // pred_check
          %p906 = pneg %p170
        $region78: #{tpu_custom_call.1} parent=75 // pred_check_branch
          %908 = sbr.rel (%p906) target = $region80
        $region79: #{tpu_custom_call.1} parent=75 // pred_region
          %s909 = sand.u32 %s155, 1
          %s910 = scalar_lea.sflag [#allocation5], %s909
          %s911 = sand.u32 %s155, 1
          %s912 = smul.addr %s911, 8
          %s913 = scalar_lea.vmem [#allocation11], %s912
          %915 = dma.done %s910, 128
        $region80: #{tpu_custom_call.1} parent=75 // pred_fallthru
          _
      $region76: #{tpu_custom_call.1} parent=5 // pred_fallthru
        _
    $region6: #{tpu_custom_call.1} parent=1 // loop_footer
      %s23 = sadd.s32 1, %s19
    $region7: #{tpu_custom_call.1} parent=1 // loop_footer_branch
      %18 = sbr.rel target = $region3
    $region8: #{tpu_custom_call.1} parent=1 // loop_exit
      _
    %916 = vsyncpa [#allocation4], 1
    %s917 = scalar_lea.sflag [#allocation4], 1
    %918 = vsyncpa %s917, 1
    %919 = vsyncpa [#allocation7], 1
    %920 = vsyncpa [#allocation10], 1
    %921 = vsyncpa [#allocation5], 1
    %s922 = scalar_lea.sflag [#allocation5], 1
    %923 = vsyncpa %s922, 1

</llo_original>
